<compile_context>
chip_gen: v7x
topology: tpu7x:2x2x1
jax: 0.10.0
libtpu: 0.0.40
codegen_flags: <defaults>
</compile_context>

<pallas_src>
import jax
import jax.numpy as jnp
from jax.experimental import pallas as pl
from jax.experimental.pallas import tpu as pltpu


# ----------------------------- kernels ------------------------------------
def _pool_kernel(x_ref, o_ref):
    # x_ref: (Bb, T, F), o_ref: (Bb, F).  Pure f32-accumulated sum over T.
    o_ref[...] = jnp.sum(x_ref[...], axis=1, dtype=jnp.float32).astype(o_ref.dtype)


def _pool_mask_kernel(x_ref, m_ref, o_ref):
    # x_ref: (Bb, T, F), m_ref: (Bb, T, 1) (same layout as x: T on sublanes,
    # broadcast along lanes), o_ref: (Bb, F).
    o_ref[...] = jnp.sum(x_ref[...] * m_ref[...], axis=1,
                         dtype=jnp.float32).astype(o_ref.dtype)


def _pool_acc_kernel(x_ref, o_ref, acc_ref):
    # Grid = (batch "parallel", T "arbitrary"); acc_ref: (Bb, F) f32 scratch.
    t = pl.program_id(1)

    @pl.when(t == 0)
    def _init():
        acc_ref[...] = jnp.zeros_like(acc_ref)

    acc_ref[...] += jnp.sum(x_ref[...], axis=1, dtype=jnp.float32)

    @pl.when(t == pl.num_programs(1) - 1)
    def _flush():
        o_ref[...] = acc_ref[...].astype(o_ref.dtype)


def _pool_mask_acc_kernel(x_ref, m_ref, o_ref, acc_ref):
    t = pl.program_id(1)

    @pl.when(t == 0)
    def _init():
        acc_ref[...] = jnp.zeros_like(acc_ref)

    acc_ref[...] += jnp.sum(x_ref[...] * m_ref[...], axis=1, dtype=jnp.float32)

    @pl.when(t == pl.num_programs(1) - 1)
    def _flush():
        o_ref[...] = acc_ref[...].astype(o_ref.dtype)


# ----------------------------- wrapper -------------------------------------
def _largest_divisor_block(total, max_block, multiple=8):
    """Largest d <= max_block with d % multiple == 0 and total % d == 0."""
    d = (min(max_block, total) // multiple) * multiple
    while d >= multiple:
        if total % d == 0:
            return d
        d -= multiple
    return None


def temporal_attention_pooling(x, conv_w=None, conv_b=None, mask=None,
                               block_b=None, block_t=None,
                               x_block_budget_bytes=2 * 1024 * 1024):
    """x: (B, T, F); conv_w: (1, F, 1) torch Conv1d weight; conv_b: (1,);
    mask: optional (B, T).  conv_w/conv_b have zero effect on the output
    (softmax over a singleton dim => attention weights == 1), so they are not
    shipped to the kernel."""
    del conv_w, conv_b  # provably no effect on the forward output
    B, T, F = x.shape
    itemsize = jnp.dtype(x.dtype).itemsize
    row_bytes = max(T * F * itemsize, 1)

    # ---- batch block: VMEM-budgeted, multiple of 8 (sublane-dense output
    # store), and >= 2 grid steps when B > 8 (v7x megacore + pipelining). ----
    if block_b is None:
        if B <= 8:
            block_b = B                      # block dim == full array dim
        else:
            budget_rows = max(8, ((x_block_budget_bytes // row_bytes) // 8) * 8)
            half_rows = ((-(-B // 2)) + 7) // 8 * 8   # round_up(ceil(B/2), 8)
            block_b = max(8, min(budget_rows, half_rows))
    n_b = pl.cdiv(B, block_b)

    # ---- T block: split T only when one x block would blow the budget. ----
    if block_t is None:
        if block_b * T * F * itemsize <= x_block_budget_bytes or T <= 8:
            block_t = T
        else:
            max_t = max(8, (x_block_budget_bytes //
                            max(block_b * F * itemsize, 1)))
            block_t = _largest_divisor_block(T, max_t) or T
            # TODO(synk): mask a ragged final T block in-kernel instead of
            # falling back to block_t=T when T has no multiple-of-8 divisor.
    n_t = pl.cdiv(T, block_t)

    # ---- VMEM limit: double-buffered inputs + outputs + accumulator,
    # generous margin, capped well under v7x's 64 MiB physical VMEM. ----
    x_blk_bytes = block_b * block_t * F * itemsize
    m_blk_bytes = 0 if mask is None else block_b * block_t * itemsize
    o_blk_bytes = block_b * F * itemsize
    acc_bytes = block_b * F * 4 if n_t > 1 else 0
    need = 2 * (x_blk_bytes + m_blk_bytes) + 2 * o_blk_bytes + acc_bytes
    vmem_limit = int(min(48 * 2**20, max(16 * 2**20, 2 * need)))

    # ---- specs / kernel selection (no jnp.pad: ragged final batch block is
    # safe — garbage only reaches output rows >= B, whose stores are clipped).
    if n_t == 1:
        grid = (n_b,)
        dims = ("parallel",)
        x_spec = pl.BlockSpec((block_b, T, F), lambda i: (i, 0, 0))
        m_spec = pl.BlockSpec((block_b, T, 1), lambda i: (i, 0, 0))
        o_spec = pl.BlockSpec((block_b, F), lambda i: (i, 0))
        scratch = []
        kernel = _pool_kernel if mask is None else _pool_mask_kernel
    else:
        grid = (n_b, n_t)
        dims = ("parallel", "arbitrary")
        x_spec = pl.BlockSpec((block_b, block_t, F), lambda i, t: (i, t, 0))
        m_spec = pl.BlockSpec((block_b, block_t, 1), lambda i, t: (i, t, 0))
        o_spec = pl.BlockSpec((block_b, F), lambda i, t: (i, 0))
        scratch = [pltpu.VMEM((block_b, F), jnp.float32)]
        kernel = _pool_acc_kernel if mask is None else _pool_mask_acc_kernel

    in_specs = [x_spec]
    args = [x]
    if mask is not None:
        # (B, T, 1): same layout as x (T on sublanes) -> cheap lane broadcast.
        args.append(jnp.asarray(mask).astype(x.dtype).reshape(B, T, 1))
        in_specs.append(m_spec)

    return pl.pallas_call(
        kernel,
        out_shape=jax.ShapeDtypeStruct((B, F), x.dtype),
        grid_spec=pltpu.PrefetchScalarGridSpec(
            num_scalar_prefetch=0,
            grid=grid,
            in_specs=in_specs,
            out_specs=o_spec,
            scratch_shapes=scratch),
        compiler_params=pltpu.CompilerParams(
            dimension_semantics=dims,
            vmem_limit_bytes=vmem_limit),
    )(*args)


# ----------------------------- reference -----------------------------------
def _reference(x, conv_w, conv_b, mask=None):
    # Pure-JAX replica of the torch forward (including the conv + softmax
    # path) for validation.
    B, T, F = x.shape
    xm = x if mask is None else x * mask[:, :, None].astype(x.dtype)
    x_a = jnp.swapaxes(xm, 1, 2)                                   # (B, F, T)
    logits = jnp.einsum("bft,f->bt", x_a, conv_w.reshape(F)) + conv_b[0]
    attn = jax.nn.softmax(logits[:, None, :], axis=1)              # size-1 dim
    x_attn = jnp.swapaxes(attn * x_a, 1, 2)                        # (B, T, F)
    return jnp.sum(x_attn, axis=1)                                 # (B, F)


if __name__ == "__main__":
    key = jax.random.PRNGKey(0)
    kx, kw, kb, km, kx2, km2 = jax.random.split(key, 6)

    # --- small demo shape: batch=2, history_len=8, in_features=32 ---
    B, T, F = 2, 8, 32
    x = jax.random.normal(kx, (B, T, F), dtype=jnp.float32)
    # Conv1d(in_features, 1, kernel_size=1): weight (1, F, 1), bias (1,)
    conv_w = jax.random.normal(kw, (1, F, 1), dtype=jnp.float32) * 0.1
    conv_b = jax.random.normal(kb, (1,), dtype=jnp.float32) * 0.1
    mask = (jax.random.uniform(km, (B, T)) > 0.3).astype(jnp.float32)

    # No mask
    out = jax.block_until_ready(temporal_attention_pooling(x, conv_w, conv_b))
    ref = _reference(x, conv_w, conv_b)
    assert out.shape == (B, F), out.shape
    assert jnp.allclose(out, ref, atol=1e-5, rtol=1e-5), "mismatch (no mask)"

    # With mask
    out_m = jax.block_until_ready(
        temporal_attention_pooling(x, conv_w, conv_b, mask=mask))
    ref_m = _reference(x, conv_w, conv_b, mask=mask)
    assert jnp.allclose(out_m, ref_m, atol=1e-5, rtol=1e-5), "mismatch (mask)"

    # --- ragged batch (no padding copy) + partial final batch block ---
    B2, T2, F2 = 20, 16, 128
    x2 = jax.random.normal(kx2, (B2, T2, F2), dtype=jnp.float32)
    mask2 = (jax.random.uniform(km2, (B2, T2)) > 0.5).astype(jnp.float32)
    ref2 = jnp.sum(x2 * mask2[:, :, None], axis=1)

    out2 = jax.block_until_ready(
        temporal_attention_pooling(x2, mask=mask2))        # auto block sizes
    assert out2.shape == (B2, F2), out2.shape
    assert jnp.allclose(out2, ref2, atol=1e-4, rtol=1e-5), "mismatch (ragged B)"

    # --- forced T-split accumulator path (grid=(3,2), partial batch block) ---
    out3 = jax.block_until_ready(
        temporal_attention_pooling(x2, mask=mask2, block_b=8, block_t=8))
    assert jnp.allclose(out3, ref2, atol=1e-4, rtol=1e-5), "mismatch (T split)"

    print("KERNEL_OK")
</pallas_src>

<mosaic_0001>
module attributes {stable_mosaic.version = 11 : i64} {
  func.func @_pool_kernel(%arg0: i32, %arg1: memref<2x8x32xf32, #tpu.memory_space<vmem>>, %arg2: memref<2x32xf32, #tpu.memory_space<vmem>>) attributes {dimension_semantics = [#tpu.dimension_semantics<parallel>], iteration_bounds = array<i64: 1>, scalar_prefetch = 0 : i64, scratch_operands = 0 : i64, tpu.core_type = #tpu.core_type<tc>, window_params = [{transform_indices = @transform_0, window_bounds = array<i64: 2, 8, 32>}, {transform_indices = @transform_1, window_bounds = array<i64: 2, 32>}]} {
    %c0 = arith.constant 0 : index
    %c0_0 = arith.constant 0 : index
    %c0_1 = arith.constant 0 : index
    %0 = vector.load %arg1[%c0, %c0_0, %c0_1] : memref<2x8x32xf32, #tpu.memory_space<vmem>>, vector<2x8x32xf32>
    %cst = arith.constant dense<0.000000e+00> : vector<2x32xf32>
    %1 = vector.multi_reduction <add>, %0, %cst [1] : vector<2x8x32xf32> to vector<2x32xf32>
    %c0_2 = arith.constant 0 : index
    %c0_3 = arith.constant 0 : index
    %2 = vector.load %arg2[%c0_2, %c0_3] : memref<2x32xf32, #tpu.memory_space<vmem>>, vector<2x32xf32>
    tpu.vector_store %arg2[%c0_2, %c0_3], %1 {strides = array<i32>} : memref<2x32xf32, #tpu.memory_space<vmem>>, vector<2x32xf32>,
    return
  }
  func.func @transform_0(%arg0: i32) -> (i32, i32, i32) {
    %c0_i32 = arith.constant 0 : i32
    %c0_i32_0 = arith.constant 0 : i32
    %c0_i32_1 = arith.constant 0 : i32
    return %arg0, %c0_i32, %c0_i32_0 : i32, i32, i32
  }
  func.func @transform_1(%arg0: i32) -> (i32, i32) {
    %c0_i32 = arith.constant 0 : i32
    %c0_i32_0 = arith.constant 0 : i32
    return %arg0, %c0_i32 : i32, i32
  }
}

</mosaic_0001>

<llo_original>
// kernel: tpu_custom_call.1
$region0: #{tpu_custom_call.1}
  #allocation0 [shape = 'u32[]', space=smem, size = 0x4, offset = 0x4, fixed_abs, tag = 'smem constant byte address 0x4 - core index']
  #allocation1 [shape = 'u32[144,128]{1,0:T(1,128)}', space=vmem, size = 0x12000, scoped, tag = 'internal scratch']
  %s0 = inlined_call_operand.hbm [shape: f32[2,8,32], index: 0, kind: input, shape index: {}]
  %s1 = inlined_call_operand.hbm [shape: f32[2,32], index: 1, kind: output, shape index: {}]
  %s2 = sld [smem:[#allocation0]]
  $region18: #{tpu_custom_call.1} parent=0
    _
  %s4 = ssub.s32 1, %s2
  %s5 = scalar_select 0, %s4, %s2
  $region1: #{tpu_custom_call.1} parent=0
    #allocation2 [shape = 'u8[8192]{0}', space=vmem, size = 0x2000, scoped, tag = 'input window, operand 0, single buffered']
    #allocation3 [shape = 's32[1]{0}', space=sflag, size = 0x4, scoped, tag = 'scoped memory for tpu_custom_call.1']
    #allocation4 [shape = 's32[1]{0}', space=sflag, size = 0x4, scoped, tag = 'scoped memory for tpu_custom_call.1']
    #allocation5 [shape = 'u8[1024]{0}', space=vmem, size = 0x400, scoped, tag = 'output window, operand 0, single buffered']
    %6 = vsyncpa [#allocation3], 0
    %7 = vsyncpa [#allocation4], 0
    // Predicated region
    $region2: #{tpu_custom_call.1} parent=1 // pred_check
      _
    $region3: #{tpu_custom_call.1} parent=1 // pred_check_branch
      %9 = sbr.rel (0) target = $region5
    $region4: #{tpu_custom_call.1} parent=1 // pred_region
      %s11 = ssub.s32 256, 256
      %12 = vsyncadd [#allocation3], %s11
      %s13 = sshll.u32 [#allocation2], 4
      %s14 = int_to_ptr.vmem [resolvable:$true] %s13
      %19 = dma.hbm_to_vmem [thread:$0]  %s0, 256, %s14, [#allocation3], 128, 128, 8
    $region5: #{tpu_custom_call.1} parent=1 // pred_fallthru
      _
    // Predicated region
    $region6: #{tpu_custom_call.1} parent=1 // pred_check
      _
    $region7: #{tpu_custom_call.1} parent=1 // pred_check_branch
      %21 = sbr.rel (0) target = $region9
    $region8: #{tpu_custom_call.1} parent=1 // pred_region
      %22 = dma.done [#allocation3], 256
    $region9: #{tpu_custom_call.1} parent=1 // pred_fallthru
      _
    %v23 = vld [vmem:[#allocation2] sm:$0xff]
    %v24 = vld [vmem:[#allocation2 + $0x8] sm:$0xff]
    %vm25 = vcmask 261120
    %v26 = vsel %vm25, %v23, 0.0
    %v27 = vrot.slane %v26, 4
    %v28 = vadd.f32 %v26, %v27
    %v29 = vrot.slane %v28, 2
    %v30 = vadd.f32 %v28, %v29
    %v31 = vrot.slane %v30, 1
    %v32 = vadd.f32 %v30, %v31
    %v33 = vsel %vm25, %v24, 0.0
    %v34 = vrot.slane %v33, 4
    %v35 = vadd.f32 %v33, %v34
    %v36 = vrot.slane %v35, 2
    %v37 = vadd.f32 %v35, %v36
    %v38 = vrot.slane %v37, 1
    %v39 = vadd.f32 %v37, %v38
    %vm42 = vcmask 1041409
    %v43 = vsel %vm42, %v39, %v32
    %vm45 = vcmask 254976
    %46 = vst.msk [vmem:[#allocation5] sm:$0x3] %vm45, %v43
    // Predicated region
    $region10: #{tpu_custom_call.1} parent=1 // pred_check
      _
    $region11: #{tpu_custom_call.1} parent=1 // pred_check_branch
      %48 = sbr.rel (0) target = $region13
    $region12: #{tpu_custom_call.1} parent=1 // pred_region
      %s50 = ssub.s32 32, 32
      %51 = vsyncadd [#allocation4], %s50
      %s53 = sshll.u32 [#allocation5], 4
      %s54 = int_to_ptr.vmem [resolvable:$true] %s53
      %56 = dma.vmem_to_hbm [thread:$0]  %s54, 32, %s1, [#allocation4]
    $region13: #{tpu_custom_call.1} parent=1 // pred_fallthru
      _
    // Predicated region
    $region14: #{tpu_custom_call.1} parent=1 // pred_check
      _
    $region15: #{tpu_custom_call.1} parent=1 // pred_check_branch
      %58 = sbr.rel (0) target = $region17
    $region16: #{tpu_custom_call.1} parent=1 // pred_region
      %59 = dma.done [#allocation4], 32
    $region17: #{tpu_custom_call.1} parent=1 // pred_fallthru
      _
    %60 = vsyncpa [#allocation3], 1
    %61 = vsyncpa [#allocation4], 1

</llo_original>
